<compile_context>
chip_gen: v6e
topology: v6e:2x2x1
jax: 0.10.0
libtpu: 0.0.40
codegen_flags: <defaults>
</compile_context>

<pallas_src>
import functools

import jax
import jax.numpy as jnp
from jax.experimental import pallas as pl
from jax.experimental.pallas import tpu as pltpu

_VM = pl.BlockSpec(memory_space=pltpu.MemorySpace.VMEM)
_HIGHEST = jax.lax.Precision.HIGHEST


@functools.lru_cache(maxsize=None)
def _vmem_limit_bytes():
    """Scoped-VMEM budget per generation (half of physical, capped at 64 MiB)."""
    try:
        cap = getattr(pltpu.get_tpu_info(), "vmem_capacity_bytes", None)
        if cap:
            return int(min(64 * 1024 * 1024, cap // 2))
    except Exception:
        pass
    return 32 * 1024 * 1024


def _pick_row_tile(total, batch, cap=512, min_steps=4):
    """Row tile: <= cap rows, multiple of 8 (or full extent), >= min_steps grid
    steps overall when there is enough work (keeps both v7x cores busy and
    bounds live f32 temporaries / vreg pressure)."""
    t = total if total <= cap else cap
    while batch * ((total + t - 1) // t) < min_steps and t > 8:
        t = max(8, ((t // 2) + 7) // 8 * 8)
    return t


# --------------------------------------------------------------------------
# Shared GAP kernels (streaming reductions with a scratch accumulator; ragged
# tail mask only evaluated on the last reduction step)
# --------------------------------------------------------------------------
def _gap_rows_kernel(x_ref, o_ref, acc_ref, *, valid_rows, scale):
    """Block (1, tile_rows, lanes): accumulate sum over the row axis."""
    r = pl.program_id(1)
    last = pl.num_programs(1) - 1

    @pl.when(r == 0)
    def _():
        acc_ref[...] = jnp.zeros_like(acc_ref)

    tile = x_ref.shape[1]
    rem = valid_rows % tile                                  # static

    def full_sum():
        acc_ref[...] += jnp.sum(x_ref[0].astype(jnp.float32), axis=0,
                                keepdims=True)

    if rem:
        @pl.when(r != last)
        def _():
            full_sum()

        @pl.when(r == last)
        def _():
            blk = x_ref[0].astype(jnp.float32)
            idx = jax.lax.broadcasted_iota(jnp.int32, blk.shape, 0)
            acc_ref[...] += jnp.sum(jnp.where(idx < rem, blk, 0.0), axis=0,
                                    keepdims=True)
    else:
        full_sum()

    @pl.when(r == last)
    def _():
        o_ref[...] = (acc_ref[...] * scale).astype(o_ref.dtype)


def _gap_cols_kernel(f_ref, o_ref, acc_ref, *, valid_cols, scale):
    """Block (tile_rows, tile_cols): accumulate sum over the lane (col) axis."""
    l = pl.program_id(1)
    last = pl.num_programs(1) - 1

    @pl.when(l == 0)
    def _():
        acc_ref[...] = jnp.zeros_like(acc_ref)

    tile = f_ref.shape[-1]
    rem = valid_cols % tile                                  # static

    def full_sum():
        acc_ref[...] += jnp.sum(f_ref[...].astype(jnp.float32), axis=-1,
                                keepdims=True)

    if rem:
        @pl.when(l != last)
        def _():
            full_sum()

        @pl.when(l == last)
        def _():
            blk = f_ref[...].astype(jnp.float32)
            idx = jax.lax.broadcasted_iota(jnp.int32, blk.shape, 1)
            acc_ref[...] += jnp.sum(jnp.where(idx < rem, blk, 0.0), axis=-1,
                                    keepdims=True)
    else:
        full_sum()

    @pl.when(l == last)
    def _():
        o_ref[...] = (acc_ref[...] * scale).astype(o_ref.dtype)


# --------------------------------------------------------------------------
# GAP of an intermediate feature map: (B, C, L) -> (B, C)
# batch*channel folded onto the sublane axis -> lane-dense streaming blocks
# --------------------------------------------------------------------------
def gap_spatial(f_bcl):
    B, C, L = f_bcl.shape
    BC = B * C
    f2 = f_bcl.reshape(BC, L)                                # free view

    if BC <= 8:
        tile_bc = BC                                         # full extent
    else:
        tile_bc = min(256, max(8, ((BC + 1) // 2 + 7) // 8 * 8))
    budget = 8 * 1024 * 1024                                 # ~8 MiB / block
    max_l = max(128, (budget // (tile_bc * 4)) // 128 * 128)
    tile_l = L if L <= max_l else max_l
    grid = ((BC + tile_bc - 1) // tile_bc, (L + tile_l - 1) // tile_l)

    out = pl.pallas_call(
        functools.partial(_gap_cols_kernel, valid_cols=L, scale=1.0 / L),
        out_shape=jax.ShapeDtypeStruct((BC, 1), f_bcl.dtype),
        grid=grid,
        in_specs=[pl.BlockSpec((tile_bc, tile_l), lambda i, l: (i, l))],
        out_specs=pl.BlockSpec((tile_bc, 1), lambda i, l: (i, 0)),
        scratch_shapes=[pltpu.VMEM((tile_bc, 1), jnp.float32)],
        compiler_params=pltpu.CompilerParams(
            dimension_semantics=("parallel", "arbitrary"),
            vmem_limit_bytes=_vmem_limit_bytes()),
    )(f2)
    return out.reshape(B, C)


# --------------------------------------------------------------------------
# GAP of x over the token axis
#   packed (lane-dense): (B, R, 128) -> per-row sums (B, 128) -> fold to (B, C)
#   generic fallback   : (B, N, C)  -> (B, C)
# --------------------------------------------------------------------------
def gap_tokens_packed(xp, C, n_valid):
    B, R, _ = xp.shape
    budget = 8 * 1024 * 1024
    cap = max(8, (budget // (128 * 4)) // 8 * 8)
    tile_r = R if R <= cap else cap
    grid = (B, (R + tile_r - 1) // tile_r)

    sums = pl.pallas_call(
        functools.partial(_gap_rows_kernel, valid_rows=R, scale=1.0),
        out_shape=jax.ShapeDtypeStruct((B, 128), jnp.float32),
        grid=grid,
        in_specs=[pl.BlockSpec((1, tile_r, 128), lambda b, r: (b, r, 0))],
        out_specs=pl.BlockSpec((1, 128), lambda b, r: (b, 0)),
        scratch_shapes=[pltpu.VMEM((1, 128), jnp.float32)],
        compiler_params=pltpu.CompilerParams(
            dimension_semantics=("parallel", "arbitrary"),
            vmem_limit_bytes=_vmem_limit_bytes()),
    )(xp)
    G = 128 // C
    # tiny 128 -> C fold + mean in plain JAX (padded tokens are zeros)
    return (sums.reshape(B, G, C).sum(axis=1) * (1.0 / n_valid)).astype(xp.dtype)


def gap_tokens(x):
    B, N, C = x.shape
    budget = 8 * 1024 * 1024
    cap = max(8, (budget // (C * 4)) // 8 * 8)
    tile_n = N if N <= cap else cap
    grid = (B, (N + tile_n - 1) // tile_n)
    return pl.pallas_call(
        functools.partial(_gap_rows_kernel, valid_rows=N, scale=1.0 / N),
        out_shape=jax.ShapeDtypeStruct((B, C), x.dtype),
        grid=grid,
        in_specs=[pl.BlockSpec((1, tile_n, C), lambda b, n: (b, n, 0))],
        out_specs=pl.BlockSpec((1, C), lambda b, n: (b, 0)),
        scratch_shapes=[pltpu.VMEM((1, C), jnp.float32)],
        compiler_params=pltpu.CompilerParams(
            dimension_semantics=("parallel", "arbitrary"),
            vmem_limit_bytes=_vmem_limit_bytes()),
    )(x)


# --------------------------------------------------------------------------
# Kernel: {1,3,5}-wide convs over stacked GAP features + per-branch Linear
#         + MLP + tanh  ->  adjusted_alpha = alpha + tanh(mlp(...))
#         (single launch, 5 packed operands)
# --------------------------------------------------------------------------
def _alpha_kernel(stacked_ref, convw_ref, linw_ref, biasv_ref, mlpw_ref, out_ref):
    s = stacked_ref[...]                                # (B, F, M)
    M = s.shape[2]
    C = out_ref.shape[-1]
    convw = convw_ref[...]                              # (F, 9) = [cw1|cw3|cw5]
    linw = linw_ref[...]                                # (M + M-2 + M-4, C)
    biasv = biasv_ref[...]                              # (6, C)
    mlpw = mlpw_ref[...]                                # (4C, C)

    def conv_along_last(w):                             # cross-correlation
        k = w.shape[1]
        L = M - k + 1
        acc = jnp.zeros((s.shape[0], L), jnp.float32)
        for kk in range(k):
            acc = acc + jnp.sum(
                s[:, :, kk:kk + L] * w[:, kk:kk + 1][None, :, :], axis=1)
        return acc                                      # (B, L)

    c1 = conv_along_last(convw[:, 0:1])
    c3 = conv_along_last(convw[:, 1:4])
    c5 = conv_along_last(convw[:, 4:9])

    L1, L3, L5 = M, M - 2, M - 4
    l1 = jnp.dot(c1, linw[0:L1], preferred_element_type=jnp.float32) + biasv[0:1]
    l3 = jnp.dot(c3, linw[L1:L1 + L3], preferred_element_type=jnp.float32) + biasv[1:2]
    l5 = jnp.dot(c5, linw[L1 + L3:L1 + L3 + L5],
                 preferred_element_type=jnp.float32) + biasv[2:3]
    feat = jnp.concatenate([l1, l3, l5], axis=-1)       # (B, 3C)

    h = jnp.maximum(
        jnp.dot(feat, mlpw[0:3 * C], preferred_element_type=jnp.float32)
        + biasv[3:4], 0.0)
    t = jnp.tanh(
        jnp.dot(h, mlpw[3 * C:4 * C], preferred_element_type=jnp.float32)
        + biasv[4:5])

    out_ref[...] = (biasv[5:6] + t).astype(out_ref.dtype)   # alpha + tanh(mlp)


def adjusted_alpha_fn(stacked, p):
    B = stacked.shape[0]
    C = p["alpha"].shape[-1]
    convw = jnp.concatenate([p["cw1"], p["cw3"], p["cw5"]], axis=1)
    linw = jnp.concatenate([p["lw1"], p["lw3"], p["lw5"]], axis=0)
    mlpw = jnp.concatenate([p["mw1"], p["mw2"]], axis=0)
    biasv = jnp.concatenate(
        [p["lb1"], p["lb3"], p["lb5"], p["mb1"], p["mb2"],
         p["alpha"].reshape(1, C)], axis=0)
    return pl.pallas_call(
        _alpha_kernel,
        out_shape=jax.ShapeDtypeStruct((B, C), jnp.float32),
        in_specs=[_VM] * 5,
        out_specs=_VM,
    )(stacked, convw, linw, biasv, mlpw)


# --------------------------------------------------------------------------
# Packed lane-dense per-token normalization + color mix + scale/shift
#   x viewed as (B, R, 128) with G = 128 // C tokens per 128-lane row.
#   mean / variance / color mix are each ONE 128x128 block-diagonal MXU matmul
#   (fp32 contract precision) -> no XLU rolls, no lane masks, unmasked stores.
# --------------------------------------------------------------------------
def _lan_norm_packed_kernel(x_ref, alpha_ref, beta_ref, mmean_ref, mvar_ref,
                            wcol_ref, o_ref):
    xr = x_ref[0].astype(jnp.float32)                   # (tile_r, 128)
    # per-token mean, replicated over each token's C lanes
    mu = jnp.dot(xr, mmean_ref[...], preferred_element_type=jnp.float32,
                 precision=_HIGHEST)
    dlt = xr - mu
    # unbiased per-token variance (torch.std): sum(dlt^2) / (C-1)
    var = jnp.dot(dlt * dlt, mvar_ref[...], preferred_element_type=jnp.float32,
                  precision=_HIGHEST)
    inv = pl.reciprocal(jnp.sqrt(var) + 0.001, approx=False)
    xn = dlt * inv
    # CxC color mix == one block-diag(color^T) matmul on the MXU
    xt = jnp.dot(xn, wcol_ref[...], preferred_element_type=jnp.float32,
                 precision=_HIGHEST)
    o_ref[0] = (xt * alpha_ref[0] + beta_ref[0]).astype(o_ref.dtype)


def _lan_norm_packed(xp, adj_alpha, beta, color):
    B, R, _ = xp.shape
    C = color.shape[0]
    G = 128 // C

    # per-lane alpha / beta (token groups tiled across the 128 lanes)
    alpha_p = jnp.tile(adj_alpha.astype(jnp.float32), (1, G)).reshape(B, 1, 128)
    beta_p = jnp.tile(beta.reshape(1, C).astype(jnp.float32),
                      (1, G)).reshape(1, 1, 128)

    # 128x128 block-diagonal operators (built once per call, 64 KiB each)
    eye_g = jnp.eye(G, dtype=jnp.float32)
    ones_cc = jnp.ones((C, C), jnp.float32)
    m_mean = jnp.kron(eye_g, ones_cc * (1.0 / C))
    m_var = jnp.kron(eye_g, ones_cc * (1.0 / (C - 1)))
    w_col = jnp.kron(eye_g, color.astype(jnp.float32).T)

    tile_r = _pick_row_tile(R, B, cap=512)
    grid = (B, (R + tile_r - 1) // tile_r)

    return pl.pallas_call(
        _lan_norm_packed_kernel,
        out_shape=jax.ShapeDtypeStruct((B, R, 128), xp.dtype),
        grid=grid,
        in_specs=[
            pl.BlockSpec((1, tile_r, 128), lambda b, r: (b, r, 0)),
            pl.BlockSpec((1, 1, 128), lambda b, r: (b, 0, 0)),
            pl.BlockSpec((1, 1, 128), lambda b, r: (0, 0, 0)),
            pl.BlockSpec((128, 128), lambda b, r: (0, 0)),
            pl.BlockSpec((128, 128), lambda b, r: (0, 0)),
            pl.BlockSpec((128, 128), lambda b, r: (0, 0)),
        ],
        out_specs=pl.BlockSpec((1, tile_r, 128), lambda b, r: (b, r, 0)),
        compiler_params=pltpu.CompilerParams(
            dimension_semantics=("parallel", "parallel"),
            vmem_limit_bytes=_vmem_limit_bytes()),
    )(xp, alpha_p, beta_p, m_mean, m_var, w_col)


# --------------------------------------------------------------------------
# Generic fallback (only for C values that do not divide 128)
# --------------------------------------------------------------------------
def _lan_norm_dense_kernel(x_ref, alpha_ref, beta_ref, colorT_ref, o_ref):
    x = x_ref[0].astype(jnp.float32)                    # (tile_n, C)
    C = x.shape[-1]
    mu = jnp.mean(x, axis=-1, keepdims=True)
    d = x - mu
    var = jnp.sum(d * d, axis=-1, keepdims=True) * (1.0 / (C - 1))
    inv = pl.reciprocal(jnp.sqrt(var) + 0.001, approx=False)
    xn = d * inv
    xt = jnp.dot(xn, colorT_ref[...], preferred_element_type=jnp.float32,
                 precision=_HIGHEST)
    o_ref[0] = (xt * alpha_ref[0] + beta_ref[...]).astype(o_ref.dtype)


def _lan_norm_dense(x, adj_alpha_3d, beta, colorT):
    B, N, C = x.shape
    cap = max(8, (2 * 1024 * 1024 // (C * 4)) // 8 * 8)
    tile_n = _pick_row_tile(N, B, cap=cap)
    grid = (B, (N + tile_n - 1) // tile_n)
    return pl.pallas_call(
        _lan_norm_dense_kernel,
        out_shape=jax.ShapeDtypeStruct((B, N, C), x.dtype),
        grid=grid,
        in_specs=[
            pl.BlockSpec((1, tile_n, C), lambda b, n: (b, n, 0)),
            pl.BlockSpec((1, 1, C), lambda b, n: (b, 0, 0)),
            pl.BlockSpec((1, C), lambda b, n: (0, 0)),
            pl.BlockSpec((C, C), lambda b, n: (0, 0)),
        ],
        out_specs=pl.BlockSpec((1, tile_n, C), lambda b, n: (b, n, 0)),
        compiler_params=pltpu.CompilerParams(
            dimension_semantics=("parallel", "parallel"),
            vmem_limit_bytes=_vmem_limit_bytes()),
    )(x, adj_alpha_3d, beta, colorT)


# --------------------------------------------------------------------------
# Full forward (glue in plain JAX, compute in the kernels above)
# --------------------------------------------------------------------------
def luminance_adaptive_norm(x, inter_feat, patch_resolution, params,
                            channel_first=True):
    if not channel_first:
        # TODO(synk): channel_first=False variant (scale/shift before the color
        # matmul) not implemented; the module default (True) is covered.
        raise NotImplementedError("channel_first=False not implemented")

    if x.ndim == 4:                                     # (B, 1, N, C) -> (B, N, C)
        B, _, N, C = x.shape
        x = x.reshape(B, N, C)
    B, N, C = x.shape
    H, W = patch_resolution
    assert H * W == N
    if C < 2:
        # torch.std over a single channel is NaN; refuse instead of dividing by 0
        raise ValueError("LuminanceAdaptiveNorm requires dim >= 2")

    packed_ok = (2 <= C <= 128) and (128 % C == 0)

    # GAP of every intermediate feature map (spatial reduce, lane-dense blocks)
    gaps = [gap_spatial(f.reshape(f.shape[0], f.shape[1], -1)) for f in inter_feat]

    xp = None
    n_pad = N
    if packed_ok:
        G = 128 // C
        n_pad = ((N + G - 1) // G) * G                  # pad tokens into the packed view
        x_p = x if n_pad == N else jnp.pad(x, ((0, 0), (0, n_pad - N), (0, 0)))
        xp = x_p.reshape(B, n_pad // G, 128)            # free, layout-preserving view
        gaps.append(gap_tokens_packed(xp, C, N))        # lane-dense GAP of x
    else:
        gaps.append(gap_tokens(x))

    max_c = max(g.shape[1] for g in gaps)
    padded = [jnp.pad(g, ((0, 0), (0, max_c - g.shape[1]))) for g in gaps]
    stacked = jnp.stack(padded, axis=1)                 # (B, F, max_c)

    # NOTE: the PyTorch module re-creates the {1,3,5}-wide convs and the
    # per-branch Linear layers with fresh random weights on every forward;
    # here they are fixed, deterministic parameters.
    adj_alpha = adjusted_alpha_fn(stacked, params)      # (B, C)

    beta = params["beta"].reshape(1, C)
    if packed_ok:
        out = _lan_norm_packed(xp, adj_alpha, beta, params["color"])
        out = out.reshape(B, n_pad, C)
        return out[:, :N, :] if n_pad != N else out

    colorT = params["color"].T                          # hoisted one-time transpose
    return _lan_norm_dense(x, adj_alpha.reshape(B, 1, C), beta, colorT)


# --------------------------------------------------------------------------
# Pure-JAX reference (PyTorch semantics; color mix done exactly, no matmul)
# --------------------------------------------------------------------------
def reference(x, inter_feat, p):
    B, N, C = x.shape
    gaps = [f.reshape(f.shape[0], f.shape[1], -1).mean(-1) for f in inter_feat]
    gaps.append(x.mean(axis=1))
    max_c = max(g.shape[1] for g in gaps)
    padded = [jnp.pad(g, ((0, 0), (0, max_c - g.shape[1]))) for g in gaps]
    stacked = jnp.stack(padded, axis=1)

    def conv(w):
        k = w.shape[1]
        L = stacked.shape[2] - k + 1
        return sum(jnp.einsum("bfl,f->bl", stacked[:, :, kk:kk + L], w[:, kk])
                   for kk in range(k))

    c1, c3, c5 = conv(p["cw1"]), conv(p["cw3"]), conv(p["cw5"])
    l1 = c1 @ p["lw1"] + p["lb1"]
    l3 = c3 @ p["lw3"] + p["lb3"]
    l5 = c5 @ p["lw5"] + p["lb5"]
    feat = jnp.concatenate([l1, l3, l5], axis=-1)
    h = jax.nn.relu(feat @ p["mw1"] + p["mb1"])
    t = jnp.tanh(h @ p["mw2"] + p["mb2"])
    adj = p["alpha"].reshape(1, 1, C) + t[:, None, :]

    mu = x.mean(-1, keepdims=True)
    sigma = jnp.sqrt(((x - mu) ** 2).sum(-1, keepdims=True) / (C - 1))
    xn = (x - mu) / (sigma + 0.001)
    xt = (xn[..., None, :] * p["color"][None, None, :, :]).sum(-1)
    return xt * adj + p["beta"].reshape(1, 1, C)


def make_params(key, C, M, F_):
    ks = jax.random.split(key, 16)
    L1, L3, L5 = M, M - 2, M - 4

    def uni(k, shape, scale):
        return jax.random.uniform(k, shape, jnp.float32, -scale, scale)

    return {
        "alpha": jnp.ones((1, C), jnp.float32),
        "beta": 0.1 * jax.random.normal(ks[0], (1, C), jnp.float32),
        "color": jnp.eye(C, dtype=jnp.float32)
                 + 0.05 * jax.random.normal(ks[1], (C, C), jnp.float32),
        "cw1": uni(ks[2], (F_, 1), 1.0 / (F_ * 1) ** 0.5),
        "cw3": uni(ks[3], (F_, 3), 1.0 / (F_ * 3) ** 0.5),
        "cw5": uni(ks[4], (F_, 5), 1.0 / (F_ * 5) ** 0.5),
        "lw1": uni(ks[5], (L1, C), 1.0 / L1 ** 0.5),
        "lb1": uni(ks[6], (1, C), 1.0 / L1 ** 0.5),
        "lw3": uni(ks[7], (L3, C), 1.0 / L3 ** 0.5),
        "lb3": uni(ks[8], (1, C), 1.0 / L3 ** 0.5),
        "lw5": uni(ks[9], (L5, C), 1.0 / L5 ** 0.5),
        "lb5": uni(ks[10], (1, C), 1.0 / L5 ** 0.5),
        "mw1": uni(ks[11], (3 * C, C), (6.0 / (3 * C)) ** 0.5),
        "mb1": uni(ks[12], (1, C), 1.0 / (3 * C) ** 0.5),
        "mw2": uni(ks[13], (C, C), (6.0 / (2 * C)) ** 0.5),
        "mb2": uni(ks[14], (1, C), 1.0 / C ** 0.5),
    }


if __name__ == "__main__":
    # ----------------- test 1: packed lane-dense path (N*C % 128 == 0) -------
    key = jax.random.PRNGKey(0)
    B, C, H, W = 2, 8, 16, 16
    N = H * W
    ks = jax.random.split(key, 4)
    x = jax.random.normal(ks[0], (B, N, C), jnp.float32)
    inter_feat = [
        jax.random.normal(ks[1], (B, 4, 32, 32), jnp.float32),
        jax.random.normal(ks[2], (B, 8, 16, 16), jnp.float32),
    ]
    F_ = len(inter_feat) + 1
    max_c = max([f.shape[1] for f in inter_feat] + [C])
    params = make_params(ks[3], C, max_c, F_)

    out = jax.block_until_ready(
        luminance_adaptive_norm(x, inter_feat, (H, W), params))
    ref = reference(x, inter_feat, params)
    assert out.shape == (B, N, C)
    assert jnp.allclose(out, ref, atol=2e-4, rtol=2e-4), \
        f"packed path mismatch, max err {jnp.max(jnp.abs(out - ref))}"

    # --------- test 2: packed path with token padding (N*C % 128 != 0) -------
    B2, C2, H2, W2 = 1, 8, 10, 20
    N2 = H2 * W2
    k2 = jax.random.split(jax.random.PRNGKey(1), 3)
    x2 = jax.random.normal(k2[0], (B2, N2, C2), jnp.float32)
    inter_feat2 = [jax.random.normal(k2[1], (B2, 4, 8, 8), jnp.float32)]
    params2 = make_params(k2[2], C2, max([4, C2]), len(inter_feat2) + 1)

    out2 = jax.block_until_ready(
        luminance_adaptive_norm(x2, inter_feat2, (H2, W2), params2))
    ref2 = reference(x2, inter_feat2, params2)
    assert jnp.allclose(out2, ref2, atol=2e-4, rtol=2e-4), \
        f"padded packed path mismatch, max err {jnp.max(jnp.abs(out2 - ref2))}"

    # ----------------- test 3: dense fallback (C does not divide 128) --------
    B3, C3, H3, W3 = 1, 12, 8, 8
    N3 = H3 * W3
    k3 = jax.random.split(jax.random.PRNGKey(2), 3)
    x3 = jax.random.normal(k3[0], (B3, N3, C3), jnp.float32)
    inter_feat3 = [jax.random.normal(k3[1], (B3, 4, 8, 8), jnp.float32)]
    params3 = make_params(k3[2], C3, max([4, C3]), len(inter_feat3) + 1)

    out3 = jax.block_until_ready(
        luminance_adaptive_norm(x3, inter_feat3, (H3, W3), params3))
    ref3 = reference(x3, inter_feat3, params3)
    assert jnp.allclose(out3, ref3, atol=5e-4, rtol=5e-4), \
        f"dense fallback mismatch, max err {jnp.max(jnp.abs(out3 - ref3))}"

    print("KERNEL_OK")
</pallas_src>

<mosaic_0001>
module attributes {stable_mosaic.version = 11 : i64} {
  func.func @_gap_cols_kernel(%arg0: i32, %arg1: i32, %arg2: memref<8x1024xf32, #tpu.memory_space<vmem>>, %arg3: memref<8x1xf32, #tpu.memory_space<vmem>>, %arg4: memref<8x1xf32, #tpu.memory_space<vmem>>) attributes {dimension_semantics = [#tpu.dimension_semantics<parallel>, #tpu.dimension_semantics<arbitrary>], iteration_bounds = array<i64: 1, 1>, scalar_prefetch = 0 : i64, scratch_operands = 1 : i64, tpu.core_type = #tpu.core_type<tc>, window_params = [{transform_indices = @transform_0, window_bounds = array<i64: 8, 1024>}, {transform_indices = @transform_1, window_bounds = array<i64: 8, 1>}]} {
    %c0_i32 = arith.constant 0 : i32
    %0 = arith.cmpi eq, %arg1, %c0_i32 : i32
    %1 = arith.extui %0 : i1 to i32
    %c0_i32_0 = arith.constant 0 : i32
    %2 = arith.cmpi ne, %1, %c0_i32_0 : i32
    scf.if %2 {
      %cst_8 = arith.constant 0.000000e+00 : f32
      %12 = vector.broadcast %cst_8 : f32 to vector<8x1xf32>
      %c0_9 = arith.constant 0 : index
      %c0_10 = arith.constant 0 : index
      %13 = vector.load %arg4[%c0_9, %c0_10] : memref<8x1xf32, #tpu.memory_space<vmem>>, vector<8x1xf32>
      tpu.vector_store %arg4[%c0_9, %c0_10], %12 {strides = array<i32>} : memref<8x1xf32, #tpu.memory_space<vmem>>, vector<8x1xf32>,
    } else {
    }
    %c0 = arith.constant 0 : index
    %c0_1 = arith.constant 0 : index
    %3 = vector.load %arg4[%c0, %c0_1] : memref<8x1xf32, #tpu.memory_space<vmem>>, vector<8x1xf32>
    %c0_2 = arith.constant 0 : index
    %c0_3 = arith.constant 0 : index
    %4 = vector.load %arg2[%c0_2, %c0_3] : memref<8x1024xf32, #tpu.memory_space<vmem>>, vector<8x1024xf32>
    %cst = arith.constant dense<0.000000e+00> : vector<8xf32>
    %5 = vector.multi_reduction <add>, %4, %cst [1] : vector<8x1024xf32> to vector<8xf32>
    %6 = vector.shape_cast %5 : vector<8xf32> to vector<8x1xf32>
    %7 = arith.addf %3, %6 : vector<8x1xf32>
    %c0_4 = arith.constant 0 : index
    %c0_5 = arith.constant 0 : index
    %8 = vector.load %arg4[%c0_4, %c0_5] : memref<8x1xf32, #tpu.memory_space<vmem>>, vector<8x1xf32>
    tpu.vector_store %arg4[%c0_4, %c0_5], %7 {strides = array<i32>} : memref<8x1xf32, #tpu.memory_space<vmem>>, vector<8x1xf32>,
    %c0_i32_6 = arith.constant 0 : i32
    %9 = arith.cmpi eq, %arg1, %c0_i32_6 : i32
    %10 = arith.extui %9 : i1 to i32
    %c0_i32_7 = arith.constant 0 : i32
    %11 = arith.cmpi ne, %10, %c0_i32_7 : i32
    scf.if %11 {
      %c0_8 = arith.constant 0 : index
      %c0_9 = arith.constant 0 : index
      %12 = vector.load %arg4[%c0_8, %c0_9] : memref<8x1xf32, #tpu.memory_space<vmem>>, vector<8x1xf32>
      %cst_10 = arith.constant 9.765625E-4 : f32
      %13 = vector.broadcast %cst_10 : f32 to vector<8x1xf32>
      %14 = arith.mulf %12, %13 : vector<8x1xf32>
      %c0_11 = arith.constant 0 : index
      %c0_12 = arith.constant 0 : index
      %15 = vector.load %arg3[%c0_11, %c0_12] : memref<8x1xf32, #tpu.memory_space<vmem>>, vector<8x1xf32>
      tpu.vector_store %arg3[%c0_11, %c0_12], %14 {strides = array<i32>} : memref<8x1xf32, #tpu.memory_space<vmem>>, vector<8x1xf32>,
    } else {
    }
    return
  }
  func.func @transform_0(%arg0: i32, %arg1: i32) -> (i32, i32) {
    %c0_i32 = arith.constant 0 : i32
    return %arg0, %arg1 : i32, i32
  }
  func.func @transform_1(%arg0: i32, %arg1: i32) -> (i32, i32) {
    %c0_i32 = arith.constant 0 : i32
    %c0_i32_0 = arith.constant 0 : i32
    return %arg0, %c0_i32 : i32, i32
  }
}

</mosaic_0001>

<llo_original>
// kernel: tpu_custom_call.1
$region0: #{tpu_custom_call.1}
  #allocation0 [shape = 'u32[]', space=smem, size = 0x4, offset = 0x4, fixed_abs, tag = 'smem constant byte address 0x4 - core index']
  #allocation1 [shape = 'u32[144,128]{1,0:T(1,128)}', space=vmem, size = 0x12000, scoped, tag = 'internal scratch']
  #allocation2 [shape = 'f32[8,1]{1,0:T(8,128)}', space=vmem, size = 0x1000, scoped, tag = 'scratch operand']
  %s0 = inlined_call_operand.hbm [shape: f32[8,1024], index: 0, kind: input, shape index: {}]
  %s1 = inlined_call_operand.vmem [shape: f32[8,1], index: 1, kind: output, shape index: {}]
  %s2 = sld [smem:[#allocation0]]
  $region26: #{tpu_custom_call.1} parent=0
    _
  %s4 = ssub.s32 1, %s2
  %s5 = scalar_select 0, %s4, %s2
  $region1: #{tpu_custom_call.1} parent=0
    #allocation3 [shape = 'u8[32768]{0}', space=vmem, size = 0x8000, scoped, tag = 'input window, operand 0, single buffered']
    #allocation4 [shape = 's32[1]{0}', space=sflag, size = 0x4, scoped, tag = 'scoped memory for tpu_custom_call.1']
    %6 = vsyncpa [#allocation4], 0
    // Predicated region
    $region2: #{tpu_custom_call.1} parent=1 // pred_check
      _
    $region3: #{tpu_custom_call.1} parent=1 // pred_check_branch
      %8 = sbr.rel (0) target = $region5
    $region4: #{tpu_custom_call.1} parent=1 // pred_region
      %s10 = ssub.s32 1024, 1024
      %11 = vsyncadd [#allocation4], %s10
      %s13 = sshll.u32 [#allocation3], 4
      %s14 = int_to_ptr.vmem [resolvable:$true] %s13
      %16 = dma.hbm_to_vmem [thread:$0]  %s0, 1024, %s14, [#allocation4]
    $region5: #{tpu_custom_call.1} parent=1 // pred_fallthru
      _
    // Predicated region
    $region6: #{tpu_custom_call.1} parent=1 // pred_check
      _
    $region7: #{tpu_custom_call.1} parent=1 // pred_check_branch
      %18 = sbr.rel (0) target = $region9
    $region8: #{tpu_custom_call.1} parent=1 // pred_region
      %19 = dma.done [#allocation4], 1024
    $region9: #{tpu_custom_call.1} parent=1 // pred_fallthru
      _
    %p20 = scmp.eq.s32.totalorder 0, 0
    // Predicated region
    $region10: #{tpu_custom_call.1} parent=1 // pred_check
      %p21 = pneg %p20
    $region11: #{tpu_custom_call.1} parent=1 // pred_check_branch
      %23 = sbr.rel (%p21) target = $region13
    $region12: #{tpu_custom_call.1} parent=1 // pred_region
      %vm24 = vcmask 7168
      %25 = vst.msk [vmem:[#allocation2] sm:$0xff] %vm24, 0.0
    $region13: #{tpu_custom_call.1} parent=1 // pred_fallthru
      _
    %v26 = vld [vmem:[#allocation2] sm:$0xff]
    %v27 = vld [vmem:[#allocation3] sm:$0xff]
    %v28 = vld [vmem:[#allocation3 + $0x8] sm:$0xff]
    %v29 = vld [vmem:[#allocation3 + $0x10] sm:$0xff]
    %v30 = vld [vmem:[#allocation3 + $0x18] sm:$0xff]
    %v31 = vld [vmem:[#allocation3 + $0x20] sm:$0xff]
    %v32 = vld [vmem:[#allocation3 + $0x28] sm:$0xff]
    %v33 = vld [vmem:[#allocation3 + $0x30] sm:$0xff]
    %v34 = vld [vmem:[#allocation3 + $0x38] sm:$0xff]
    %v35 = vadd.f32 %v27, %v28
    %v36 = vadd.f32 %v35, %v29
    %v37 = vadd.f32 %v36, %v30
    %v38 = vadd.f32 %v37, %v31
    %v39 = vadd.f32 %v38, %v32
    %v40 = vadd.f32 %v39, %v33
    %v41 = vadd.f32 %v40, %v34
    %42 = vadd.xlane.f32.xlu0 %v41
    %v43 = vpop.xlane.xlu0 %42
    %v44 = vadd.f32 %v26, %v43
    %vm45 = vcmask 7168
    %46 = vst.msk [vmem:[#allocation2] sm:$0xff] %vm45, %v44
    // Predicated region
    $region14: #{tpu_custom_call.1} parent=1 // pred_check
      %p47 = pneg %p20
    $region15: #{tpu_custom_call.1} parent=1 // pred_check_branch
      %49 = sbr.rel (%p47) target = $region17
    $region16: #{tpu_custom_call.1} parent=1 // pred_region
      %v50 = vld [vmem:[#allocation2] sm:$0xff]
      %v51 = vmul.f32 %v50, 0.0009765625
      %52 = vst.msk [vmem:[%s1] sm:$0xff] %vm45, %v51
    $region17: #{tpu_custom_call.1} parent=1 // pred_fallthru
      _
    // Predicated region
    $region18: #{tpu_custom_call.1} parent=1 // pred_check
      _
    $region19: #{tpu_custom_call.1} parent=1 // pred_check_branch
      %54 = sbr.rel (0) target = $region21
    $region20: #{tpu_custom_call.1} parent=1 // pred_region
      _
    $region21: #{tpu_custom_call.1} parent=1 // pred_fallthru
      _
    // Predicated region
    $region22: #{tpu_custom_call.1} parent=1 // pred_check
      _
    $region23: #{tpu_custom_call.1} parent=1 // pred_check_branch
      %56 = sbr.rel (0) target = $region25
    $region24: #{tpu_custom_call.1} parent=1 // pred_region
      _
    $region25: #{tpu_custom_call.1} parent=1 // pred_fallthru
      _
    %57 = vsyncpa [#allocation4], 1

</llo_original>
